<compile_context>
chip_gen: v6e
topology: v6e:2x2x1
jax: 0.10.0
libtpu: 0.0.40
codegen_flags: <defaults>
</compile_context>

<pallas_src>
import functools

import jax
import jax.numpy as jnp
from jax.experimental import pallas as pl
from jax.experimental.pallas import tpu as pltpu

_LANES = 128
_MAX_BLOCK_ROWS = 4096  # (4096, 128) f32 = 2 MiB per pipeline buffer


def _round_up(x, m):
    return ((x + m - 1) // m) * m


def _vmem_limit_bytes(num_streams, block_rows):
    # Double-buffered streams (f32 upper bound) + scratch/headroom, clamped so
    # it never exceeds v7x's 64 MiB physical VMEM (48 MiB cap).
    need = num_streams * 2 * block_rows * _LANES * 4 + (4 << 20)
    return int(min(max(need, 32 << 20), 48 << 20))


# ----------------------------- kernels ------------------------------------ #

def _l1_elem_kernel(pred_ref, target_ref, out_ref, *, scale):
    loss = jnp.abs(pred_ref[...].astype(jnp.float32)
                   - target_ref[...].astype(jnp.float32))
    if scale != 1.0:
        loss = loss * scale
    out_ref[...] = loss.astype(out_ref.dtype)


def _l1_elem_kernel_w(pred_ref, target_ref, weight_ref, out_ref, *, scale):
    loss = jnp.abs(pred_ref[...].astype(jnp.float32)
                   - target_ref[...].astype(jnp.float32))
    loss = loss * weight_ref[...].astype(jnp.float32)
    if scale != 1.0:
        loss = loss * scale
    out_ref[...] = loss.astype(out_ref.dtype)


def _sum_body(loss, out_ref, acc_ref, *, rows, block_rows, bpp,
              first_masked_block, any_mask):
    k = pl.program_id(1)
    gb = pl.program_id(0) * bpp + k  # global block index (unclamped)

    @pl.when(k == 0)
    def _():
        acc_ref[...] = jnp.zeros_like(acc_ref)

    def _accum(x):
        # Collapse the block to an (8, 128) partial with pure VPU vreg adds
        # (one (8,128) group per vreg); keeps the accumulator tiny.
        acc_ref[...] += x.reshape(block_rows // 8, 8, _LANES).sum(axis=0)

    if any_mask:
        @pl.when(gb < first_masked_block)
        def _():
            _accum(loss)

        @pl.when(gb >= first_masked_block)
        def _():
            # Last real block (rows past the array end come from uninitialized
            # VMEM) and grid-overflow duplicate blocks: zero rows >= `rows`.
            rid = (gb * block_rows
                   + jax.lax.broadcasted_iota(jnp.int32, loss.shape, 0))
            _accum(jnp.where(rid < rows, loss, 0.0))
    else:
        _accum(loss)

    @pl.when(k == pl.num_programs(1) - 1)
    def _():
        out_ref[...] = acc_ref[...]


def _l1_sum_kernel(pred_ref, target_ref, out_ref, acc_ref, **kw):
    loss = jnp.abs(pred_ref[...].astype(jnp.float32)
                   - target_ref[...].astype(jnp.float32))
    _sum_body(loss, out_ref, acc_ref, **kw)


def _l1_sum_kernel_w(pred_ref, target_ref, weight_ref, out_ref, acc_ref, **kw):
    loss = jnp.abs(pred_ref[...].astype(jnp.float32)
                   - target_ref[...].astype(jnp.float32))
    loss = loss * weight_ref[...].astype(jnp.float32)
    _sum_body(loss, out_ref, acc_ref, **kw)


# ----------------------------- wrapper ------------------------------------ #

def _to_lanes(x, total, padded_total):
    flat = jnp.ravel(x)
    if padded_total != total:
        # Only needed when numel is not a multiple of 128 (rare); padded
        # elements are zero so they never contribute to the loss.
        flat = jnp.pad(flat, (0, padded_total - total))
    return flat.reshape(padded_total // _LANES, _LANES)


def l1_loss_pallas(pred, target, weight=None, *, reduction="mean",
                   avg_factor=None, loss_weight=1.0):
    """Reproduces mmdet L1Loss.forward (weighted_loss semantics)."""
    assert reduction in ("none", "mean", "sum")
    assert pred.shape == target.shape

    if pred.size == 0:
        # torch degenerate path returns pred.sum() * 0; keep a shape-consistent
        # empty tensor for reduction='none'.
        if reduction == "none":
            return pred * 0
        return (jnp.sum(pred) * 0).astype(pred.dtype)

    # TODO(synk): torch's short-circuit `if weight is not None and not
    # torch.any(weight > 0): return (pred * weight).sum()` is data-dependent
    # control flow; numerically it only changes the result for
    # reduction='none', so it is not special-cased here.

    orig_shape = pred.shape
    total = pred.size
    padded_total = _round_up(total, _LANES)
    rows = padded_total // _LANES
    # block_rows kept a multiple of 8 so the in-kernel (n, 8, 128) collapse is
    # layout-trivial; a block extending past `rows` is handled by the mask.
    block_rows = min(_round_up(rows, 8), _MAX_BLOCK_ROWS)
    num_blocks = pl.cdiv(rows, block_rows)

    operands = [_to_lanes(pred, total, padded_total),
                _to_lanes(target, total, padded_total)]

    if weight is not None:
        w = weight
        if w.ndim == pred.ndim - 1:  # mmdet per-anchor weight convention
            w = jnp.expand_dims(w, -1)
        if w.shape != orig_shape:
            # TODO(synk): broadcast weights could be expanded in-kernel (small
            # operand with its own BlockSpec) instead of materialized; the
            # common full-shape weight path skips this entirely.
            w = jnp.broadcast_to(w, orig_shape)
        operands.append(_to_lanes(w, total, padded_total))  # native dtype

    n_streams = len(operands)
    tile_spec = pl.BlockSpec((block_rows, _LANES), lambda i: (i, 0))

    if reduction == "none":
        kern = _l1_elem_kernel_w if weight is not None else _l1_elem_kernel
        out2d = pl.pallas_call(
            functools.partial(kern, scale=float(loss_weight)),
            out_shape=jax.ShapeDtypeStruct((rows, _LANES), pred.dtype),
            grid_spec=pltpu.PrefetchScalarGridSpec(
                num_scalar_prefetch=0,
                grid=(num_blocks,),
                in_specs=[tile_spec] * n_streams,
                out_specs=tile_spec,
            ),
            compiler_params=pltpu.CompilerParams(
                dimension_semantics=("parallel",),
                vmem_limit_bytes=_vmem_limit_bytes(n_streams + 1, block_rows)),
        )(*operands)
        # Rows of a partial tail block beyond `rows` are computed from
        # uninitialized VMEM but never stored: Pallas clips the output
        # writeback to the array bounds, so no masking is needed here.
        flat = out2d.reshape(-1)
        if padded_total != total:
            flat = flat[:total]
        return flat.reshape(orig_shape)

    # ---- 'mean' / 'sum': fused in-kernel reduction -------------------------
    # Leading 'parallel' axis splits the rows into disjoint partitions so both
    # TensorCores (v7x megacore) stream from HBM; trailing 'arbitrary' axis is
    # the per-partition reduction.  Neutral on single-TC chips.
    num_parts = 2 if num_blocks >= 2 else 1
    bpp = pl.cdiv(num_blocks, num_parts)  # blocks per partition
    first_masked_block = (num_blocks - 1 if rows % block_rows != 0
                          else num_blocks)
    any_mask = (rows % block_rows != 0) or (num_parts * bpp != num_blocks)

    def in_map(p, k):
        # Clamp grid-overflow blocks onto the last real block; the kernel
        # masks their contribution to zero.
        return (jnp.minimum(p * bpp + k, num_blocks - 1), 0)

    kern = _l1_sum_kernel_w if weight is not None else _l1_sum_kernel
    partials = pl.pallas_call(
        functools.partial(kern, rows=rows, block_rows=block_rows, bpp=bpp,
                          first_masked_block=first_masked_block,
                          any_mask=any_mask),
        out_shape=jax.ShapeDtypeStruct((num_parts * 8, _LANES), jnp.float32),
        grid_spec=pltpu.PrefetchScalarGridSpec(
            num_scalar_prefetch=0,
            grid=(num_parts, bpp),
            in_specs=[pl.BlockSpec((block_rows, _LANES), in_map)] * n_streams,
            out_specs=pl.BlockSpec((8, _LANES), lambda p, k: (p, 0)),
            scratch_shapes=[pltpu.VMEM((8, _LANES), jnp.float32)],
        ),
        compiler_params=pltpu.CompilerParams(
            dimension_semantics=("parallel", "arbitrary"),
            vmem_limit_bytes=_vmem_limit_bytes(n_streams + 1, block_rows)),
    )(*operands)

    total_sum = jnp.sum(partials)  # (num_parts*8, 128) f32 partials -> scalar

    if reduction == "sum":
        loss = total_sum
    else:  # mean
        denom = (jnp.asarray(avg_factor, dtype=jnp.float32)
                 if avg_factor is not None else jnp.float32(total))
        loss = total_sum / denom

    return (loss_weight * loss).astype(pred.dtype)


class L1Loss:
    """JAX/Pallas port of mmdet L1Loss (forward only, no parameters)."""

    def __init__(self, reduction="mean", loss_weight=1.0):
        self.reduction = reduction
        self.loss_weight = loss_weight

    def __call__(self, pred, target, weight=None, avg_factor=None,
                 reduction_override=None):
        assert reduction_override in (None, "none", "mean", "sum")
        reduction = reduction_override if reduction_override else self.reduction
        return l1_loss_pallas(
            pred, target, weight,
            reduction=reduction, avg_factor=avg_factor,
            loss_weight=self.loss_weight)


if __name__ == "__main__":
    key = jax.random.PRNGKey(0)
    k1, k2, k3, k4, k5, k6 = jax.random.split(key, 6)

    # detection-like small inputs
    x = jax.random.normal(k1, (2, 4, 16, 16), dtype=jnp.float32)
    t = jax.random.normal(k2, (2, 4, 16, 16), dtype=jnp.float32)
    w = (jax.random.uniform(k3, (2, 4, 16, 16)) > 0.3).astype(jnp.float32)

    loss_mod = L1Loss(reduction="mean", loss_weight=1.0)

    out_mean = loss_mod(x, t, weight=w, avg_factor=123)          # weighted mean
    out_sum = loss_mod(x, t, reduction_override="sum")           # unweighted sum
    out_none = loss_mod(x, t, weight=w, reduction_override="none")

    # multi-block case: rows=4400 -> 2 blocks -> 2 parallel partitions with a
    # masked partial tail block (also exercises the 'none' clipped writeback).
    xb = jax.random.normal(k4, (4, 4, 200, 176), dtype=jnp.float32)
    tb = jax.random.normal(k5, (4, 4, 200, 176), dtype=jnp.float32)
    wb = (jax.random.uniform(k6, (4, 4, 200, 176)) > 0.5).astype(jnp.float32)
    out_big_sum = loss_mod(xb, tb, weight=wb, reduction_override="sum")
    out_big_mean = loss_mod(xb, tb, reduction_override="mean")
    out_big_none = loss_mod(xb, tb, weight=wb, reduction_override="none")

    # element count not a multiple of 128 (lane padding + rounded block rows)
    xs = jax.random.normal(k1, (3, 7, 33, 13), dtype=jnp.float32)
    ts = jax.random.normal(k2, (3, 7, 33, 13), dtype=jnp.float32)
    out_small_sum = loss_mod(xs, ts, reduction_override="sum")

    jax.block_until_ready((out_mean, out_sum, out_none, out_big_sum,
                           out_big_mean, out_big_none, out_small_sum))

    # reference check in plain JAX
    def ref(pred, target, weight, reduction, avg_factor):
        l = jnp.abs(pred - target)
        if weight is not None:
            l = l * weight
        if reduction == "none":
            return l
        s = jnp.sum(l)
        if reduction == "sum":
            return s
        return s / (avg_factor if avg_factor is not None else l.size)

    assert jnp.allclose(out_mean, ref(x, t, w, "mean", 123), rtol=1e-5, atol=1e-5)
    assert jnp.allclose(out_sum, ref(x, t, None, "sum", None), rtol=1e-5, atol=1e-3)
    assert jnp.allclose(out_none, ref(x, t, w, "none", None), rtol=1e-5, atol=1e-5)
    assert jnp.allclose(out_big_sum, ref(xb, tb, wb, "sum", None), rtol=1e-4, atol=1e-2)
    assert jnp.allclose(out_big_mean, ref(xb, tb, None, "mean", None), rtol=1e-4, atol=1e-4)
    assert jnp.allclose(out_big_none, ref(xb, tb, wb, "none", None), rtol=1e-5, atol=1e-5)
    assert jnp.allclose(out_small_sum, ref(xs, ts, None, "sum", None), rtol=1e-5, atol=1e-3)

    print("KERNEL_OK")
</pallas_src>

<mosaic_0001>
module attributes {stable_mosaic.version = 11 : i64} {
  func.func @_l1_sum_kernel_w(%arg0: i32, %arg1: i32, %arg2: memref<16x128xf32, #tpu.memory_space<vmem>>, %arg3: memref<16x128xf32, #tpu.memory_space<vmem>>, %arg4: memref<16x128xf32, #tpu.memory_space<vmem>>, %arg5: memref<8x128xf32, #tpu.memory_space<vmem>>, %arg6: memref<8x128xf32, #tpu.memory_space<vmem>>) attributes {dimension_semantics = [#tpu.dimension_semantics<parallel>, #tpu.dimension_semantics<arbitrary>], iteration_bounds = array<i64: 1, 1>, scalar_prefetch = 0 : i64, scratch_operands = 1 : i64, tpu.core_type = #tpu.core_type<tc>, window_params = [{transform_indices = @transform_0, window_bounds = array<i64: 16, 128>}, {transform_indices = @transform_1, window_bounds = array<i64: 16, 128>}, {transform_indices = @transform_2, window_bounds = array<i64: 16, 128>}, {transform_indices = @transform_3, window_bounds = array<i64: 8, 128>}]} {
    %c0 = arith.constant 0 : index
    %c0_0 = arith.constant 0 : index
    %0 = vector.load %arg2[%c0, %c0_0] : memref<16x128xf32, #tpu.memory_space<vmem>>, vector<16x128xf32>
    %c0_1 = arith.constant 0 : index
    %c0_2 = arith.constant 0 : index
    %1 = vector.load %arg3[%c0_1, %c0_2] : memref<16x128xf32, #tpu.memory_space<vmem>>, vector<16x128xf32>
    %2 = arith.subf %0, %1 : vector<16x128xf32>
    %3 = math.absf %2 : vector<16x128xf32>
    %c0_3 = arith.constant 0 : index
    %c0_4 = arith.constant 0 : index
    %4 = vector.load %arg4[%c0_3, %c0_4] : memref<16x128xf32, #tpu.memory_space<vmem>>, vector<16x128xf32>
    %5 = arith.mulf %3, %4 : vector<16x128xf32>
    %c0_i32 = arith.constant 0 : i32
    %6 = arith.cmpi eq, %arg1, %c0_i32 : i32
    %7 = arith.extui %6 : i1 to i32
    %c0_i32_5 = arith.constant 0 : i32
    %8 = arith.cmpi ne, %7, %c0_i32_5 : i32
    scf.if %8 {
      %cst_12 = arith.constant 0.000000e+00 : f32
      %17 = vector.broadcast %cst_12 : f32 to vector<8x128xf32>
      %c0_13 = arith.constant 0 : index
      %c0_14 = arith.constant 0 : index
      %18 = vector.load %arg6[%c0_13, %c0_14] : memref<8x128xf32, #tpu.memory_space<vmem>>, vector<8x128xf32>
      tpu.vector_store %arg6[%c0_13, %c0_14], %17 {strides = array<i32>} : memref<8x128xf32, #tpu.memory_space<vmem>>, vector<8x128xf32>,
    } else {
    }
    %c0_6 = arith.constant 0 : index
    %c0_7 = arith.constant 0 : index
    %9 = vector.load %arg6[%c0_6, %c0_7] : memref<8x128xf32, #tpu.memory_space<vmem>>, vector<8x128xf32>
    %10 = vector.shape_cast %5 : vector<16x128xf32> to vector<2x8x128xf32>
    %cst = arith.constant dense<0.000000e+00> : vector<8x128xf32>
    %11 = vector.multi_reduction <add>, %10, %cst [0] : vector<2x8x128xf32> to vector<8x128xf32>
    %12 = arith.addf %9, %11 : vector<8x128xf32>
    %c0_8 = arith.constant 0 : index
    %c0_9 = arith.constant 0 : index
    %13 = vector.load %arg6[%c0_8, %c0_9] : memref<8x128xf32, #tpu.memory_space<vmem>>, vector<8x128xf32>
    tpu.vector_store %arg6[%c0_8, %c0_9], %12 {strides = array<i32>} : memref<8x128xf32, #tpu.memory_space<vmem>>, vector<8x128xf32>,
    %c0_i32_10 = arith.constant 0 : i32
    %14 = arith.cmpi eq, %arg1, %c0_i32_10 : i32
    %15 = arith.extui %14 : i1 to i32
    %c0_i32_11 = arith.constant 0 : i32
    %16 = arith.cmpi ne, %15, %c0_i32_11 : i32
    scf.if %16 {
      %c0_12 = arith.constant 0 : index
      %c0_13 = arith.constant 0 : index
      %17 = vector.load %arg6[%c0_12, %c0_13] : memref<8x128xf32, #tpu.memory_space<vmem>>, vector<8x128xf32>
      %c0_14 = arith.constant 0 : index
      %c0_15 = arith.constant 0 : index
      %18 = vector.load %arg5[%c0_14, %c0_15] : memref<8x128xf32, #tpu.memory_space<vmem>>, vector<8x128xf32>
      tpu.vector_store %arg5[%c0_14, %c0_15], %17 {strides = array<i32>} : memref<8x128xf32, #tpu.memory_space<vmem>>, vector<8x128xf32>,
    } else {
    }
    return
  }
  func.func @transform_0(%arg0: i32, %arg1: i32) -> (i32, i32) {
    %c1_i32 = arith.constant 1 : i32
    %0 = arith.muli %arg0, %c1_i32 : i32
    %1 = arith.addi %0, %arg1 : i32
    %c0_i32 = arith.constant 0 : i32
    %2 = arith.minsi %1, %c0_i32 : i32
    %c0_i32_0 = arith.constant 0 : i32
    %c0_i32_1 = arith.constant 0 : i32
    return %2, %c0_i32_0 : i32, i32
  }
  func.func @transform_1(%arg0: i32, %arg1: i32) -> (i32, i32) {
    %c1_i32 = arith.constant 1 : i32
    %0 = arith.muli %arg0, %c1_i32 : i32
    %1 = arith.addi %0, %arg1 : i32
    %c0_i32 = arith.constant 0 : i32
    %2 = arith.minsi %1, %c0_i32 : i32
    %c0_i32_0 = arith.constant 0 : i32
    %c0_i32_1 = arith.constant 0 : i32
    return %2, %c0_i32_0 : i32, i32
  }
  func.func @transform_2(%arg0: i32, %arg1: i32) -> (i32, i32) {
    %c1_i32 = arith.constant 1 : i32
    %0 = arith.muli %arg0, %c1_i32 : i32
    %1 = arith.addi %0, %arg1 : i32
    %c0_i32 = arith.constant 0 : i32
    %2 = arith.minsi %1, %c0_i32 : i32
    %c0_i32_0 = arith.constant 0 : i32
    %c0_i32_1 = arith.constant 0 : i32
    return %2, %c0_i32_0 : i32, i32
  }
  func.func @transform_3(%arg0: i32, %arg1: i32) -> (i32, i32) {
    %c0_i32 = arith.constant 0 : i32
    %c0_i32_0 = arith.constant 0 : i32
    return %arg0, %c0_i32 : i32, i32
  }
}

</mosaic_0001>

<llo_original>
// kernel: tpu_custom_call.1
$region0: #{tpu_custom_call.1}
  #allocation0 [shape = 'u32[]', space=smem, size = 0x4, offset = 0x4, fixed_abs, tag = 'smem constant byte address 0x4 - core index']
  #allocation1 [shape = 'u32[144,128]{1,0:T(1,128)}', space=vmem, size = 0x12000, scoped, tag = 'internal scratch']
  #allocation2 [shape = 'f32[8,128]{1,0:T(8,128)}', space=vmem, size = 0x1000, scoped, tag = 'scratch operand']
  %s0 = inlined_call_operand.hbm [shape: f32[16,128], index: 0, kind: input, shape index: {}]
  %s1 = inlined_call_operand.hbm [shape: f32[16,128], index: 1, kind: input, shape index: {}]
  %s2 = inlined_call_operand.hbm [shape: f32[16,128], index: 2, kind: input, shape index: {}]
  %s3 = inlined_call_operand.hbm [shape: f32[8,128], index: 3, kind: output, shape index: {}]
  %s4 = sld [smem:[#allocation0]]
  $region42: #{tpu_custom_call.1} parent=0
    _
  %s6 = ssub.s32 1, %s4
  %s7 = scalar_select 0, %s6, %s4
  $region1: #{tpu_custom_call.1} parent=0
    #allocation3 [shape = 'u8[8192]{0}', space=vmem, size = 0x2000, scoped, tag = 'input window, operand 0, single buffered']
    #allocation4 [shape = 's32[1]{0}', space=sflag, size = 0x4, scoped, tag = 'scoped memory for tpu_custom_call.1']
    #allocation5 [shape = 's32[1]{0}', space=sflag, size = 0x4, scoped, tag = 'scoped memory for tpu_custom_call.1']
    #allocation6 [shape = 'u8[8192]{0}', space=vmem, size = 0x2000, scoped, tag = 'input window, operand 1, single buffered']
    #allocation7 [shape = 's32[1]{0}', space=sflag, size = 0x4, scoped, tag = 'scoped memory for tpu_custom_call.1']
    #allocation8 [shape = 'u8[8192]{0}', space=vmem, size = 0x2000, scoped, tag = 'input window, operand 2, single buffered']
    #allocation9 [shape = 'u8[4096]{0}', space=vmem, size = 0x1000, scoped, tag = 'output window, operand 0, single buffered']
    %8 = vsyncpa [#allocation4], 0
    %9 = vsyncpa [#allocation7], 0
    %10 = vsyncpa [#allocation5], 0
    // Predicated region
    $region2: #{tpu_custom_call.1} parent=1 // pred_check
      _
    $region3: #{tpu_custom_call.1} parent=1 // pred_check_branch
      %12 = sbr.rel (0) target = $region5
    $region4: #{tpu_custom_call.1} parent=1 // pred_region
      %s13 = sadd.s32 0, 0
      %p14 = scmp.lt.s32.totalorder %s13, 0
      %s15 = scalar_select %p14, %s13, 0
      %s16 = smul.u32 2, %s15
      %s18 = ssub.s32 256, 256
      %19 = vsyncadd [#allocation4], %s18
      %s20 = smul.addr %s16, 128
      %s21 = scalar_lea.hbm %s0, %s20
      %s22 = sshll.u32 [#allocation3], 4
      %s23 = int_to_ptr.vmem [resolvable:$true] %s22
      %28 = dma.hbm_to_vmem [thread:$0]  %s21, 256, %s23, [#allocation4], 128, 128, 8
    $region5: #{tpu_custom_call.1} parent=1 // pred_fallthru
      _
    // Predicated region
    $region6: #{tpu_custom_call.1} parent=1 // pred_check
      _
    $region7: #{tpu_custom_call.1} parent=1 // pred_check_branch
      %30 = sbr.rel (0) target = $region9
    $region8: #{tpu_custom_call.1} parent=1 // pred_region
      %s31 = sadd.s32 0, 0
      %p32 = scmp.lt.s32.totalorder %s31, 0
      %s33 = scalar_select %p32, %s31, 0
      %s34 = smul.u32 2, %s33
      %s36 = ssub.s32 256, 256
      %37 = vsyncadd [#allocation7], %s36
      %s38 = smul.addr %s34, 128
      %s39 = scalar_lea.hbm %s1, %s38
      %s40 = sshll.u32 [#allocation6], 4
      %s41 = int_to_ptr.vmem [resolvable:$true] %s40
      %46 = dma.hbm_to_vmem [thread:$0]  %s39, 256, %s41, [#allocation7], 128, 128, 8
    $region9: #{tpu_custom_call.1} parent=1 // pred_fallthru
      _
    // Predicated region
    $region10: #{tpu_custom_call.1} parent=1 // pred_check
      _
    $region11: #{tpu_custom_call.1} parent=1 // pred_check_branch
      %48 = sbr.rel (0) target = $region13
    $region12: #{tpu_custom_call.1} parent=1 // pred_region
      %s49 = sadd.s32 0, 0
      %p50 = scmp.lt.s32.totalorder %s49, 0
      %s51 = scalar_select %p50, %s49, 0
      %s52 = smul.u32 2, %s51
      %s54 = ssub.s32 256, 256
      %55 = vsyncadd [#allocation7], %s54
      %s56 = smul.addr %s52, 128
      %s57 = scalar_lea.hbm %s2, %s56
      %s58 = sshll.u32 [#allocation8], 4
      %s59 = int_to_ptr.vmem [resolvable:$true] %s58
      %64 = dma.hbm_to_vmem [thread:$0]  %s57, 256, %s59, [#allocation7], 128, 128, 8
    $region13: #{tpu_custom_call.1} parent=1 // pred_fallthru
      _
    // Predicated region
    $region14: #{tpu_custom_call.1} parent=1 // pred_check
      _
    $region15: #{tpu_custom_call.1} parent=1 // pred_check_branch
      %66 = sbr.rel (0) target = $region17
    $region16: #{tpu_custom_call.1} parent=1 // pred_region
      %67 = dma.done [#allocation4], 256
    $region17: #{tpu_custom_call.1} parent=1 // pred_fallthru
      _
    // Predicated region
    $region18: #{tpu_custom_call.1} parent=1 // pred_check
      _
    $region19: #{tpu_custom_call.1} parent=1 // pred_check_branch
      %69 = sbr.rel (0) target = $region21
    $region20: #{tpu_custom_call.1} parent=1 // pred_region
      %70 = dma.done [#allocation7], 256
    $region21: #{tpu_custom_call.1} parent=1 // pred_fallthru
      _
    // Predicated region
    $region22: #{tpu_custom_call.1} parent=1 // pred_check
      _
    $region23: #{tpu_custom_call.1} parent=1 // pred_check_branch
      %72 = sbr.rel (0) target = $region25
    $region24: #{tpu_custom_call.1} parent=1 // pred_region
      %73 = dma.done [#allocation7], 256
    $region25: #{tpu_custom_call.1} parent=1 // pred_fallthru
      _
    %s74 = sadd.s32 0, 0
    %p75 = scmp.lt.s32.totalorder %s74, 0
    %s76 = scalar_select %p75, %s74, 0
    %s77 = smul.u32 2, %s76
    %s78 = sadd.s32 0, 0
    %p79 = scmp.lt.s32.totalorder %s78, 0
    %s80 = scalar_select %p79, %s78, 0
    %s81 = smul.u32 2, %s80
    %s82 = sadd.s32 0, 0
    %p83 = scmp.lt.s32.totalorder %s82, 0
    %s84 = scalar_select %p83, %s82, 0
    %s85 = smul.u32 2, %s84
    %v86 = vld [vmem:[#allocation3] sm:$0xff]
    %v87 = vld [vmem:[#allocation3 + $0x8] sm:$0xff]
    %v88 = vld [vmem:[#allocation6] sm:$0xff]
    %v89 = vld [vmem:[#allocation6 + $0x8] sm:$0xff]
    %v90 = vsub.f32 %v86, %v88
    %v91 = vsub.f32 %v87, %v89
    %v92 = vand.u32 2147483647, %v90
    %v93 = vand.u32 2147483647, %v91
    %v94 = vld [vmem:[#allocation8] sm:$0xff]
    %v95 = vld [vmem:[#allocation8 + $0x8] sm:$0xff]
    %v96 = vmul.f32 %v92, %v94
    %v97 = vmul.f32 %v93, %v95
    %p98 = scmp.eq.s32.totalorder 0, 0
    // Predicated region
    $region26: #{tpu_custom_call.1} parent=1 // pred_check
      %p99 = pneg %p98
    $region27: #{tpu_custom_call.1} parent=1 // pred_check_branch
      %101 = sbr.rel (%p99) target = $region29
    $region28: #{tpu_custom_call.1} parent=1 // pred_region
      %102 = vst [vmem:[#allocation2] sm:$0xff] 0.0
    $region29: #{tpu_custom_call.1} parent=1 // pred_fallthru
      _
    %v103 = vld [vmem:[#allocation2] sm:$0xff]
    %v104 = vadd.f32 %v96, %v97
    %v105 = vadd.f32 %v103, %v104
    %106 = vst [vmem:[#allocation2] sm:$0xff] %v105
    // Predicated region
    $region30: #{tpu_custom_call.1} parent=1 // pred_check
      %p107 = pneg %p98
    $region31: #{tpu_custom_call.1} parent=1 // pred_check_branch
      %109 = sbr.rel (%p107) target = $region33
    $region32: #{tpu_custom_call.1} parent=1 // pred_region
      %v110 = vld [vmem:[#allocation2] sm:$0xff]
      %111 = vst [vmem:[#allocation9] sm:$0xff] %v110
    $region33: #{tpu_custom_call.1} parent=1 // pred_fallthru
      _
    // Predicated region
    $region34: #{tpu_custom_call.1} parent=1 // pred_check
      _
    $region35: #{tpu_custom_call.1} parent=1 // pred_check_branch
      %113 = sbr.rel (0) target = $region37
    $region36: #{tpu_custom_call.1} parent=1 // pred_region
      %s115 = ssub.s32 128, 128
      %116 = vsyncadd [#allocation5], %s115
      %s118 = sshll.u32 [#allocation9], 4
      %s119 = int_to_ptr.vmem [resolvable:$true] %s118
      %121 = dma.vmem_to_hbm [thread:$0]  %s119, 128, %s3, [#allocation5]
    $region37: #{tpu_custom_call.1} parent=1 // pred_fallthru
      _
    // Predicated region
    $region38: #{tpu_custom_call.1} parent=1 // pred_check
      _
    $region39: #{tpu_custom_call.1} parent=1 // pred_check_branch
      %123 = sbr.rel (0) target = $region41
    $region40: #{tpu_custom_call.1} parent=1 // pred_region
      %124 = dma.done [#allocation5], 128
    $region41: #{tpu_custom_call.1} parent=1 // pred_fallthru
      _
    %125 = vsyncpa [#allocation4], 1
    %126 = vsyncpa [#allocation7], 1
    %127 = vsyncpa [#allocation5], 1

</llo_original>
